<compile_context>
chip_gen: v5e
topology: v5e:2x2
jax: 0.10.0
libtpu: 0.0.40
codegen_flags: <defaults>
</compile_context>

<pallas_src>
import jax
import jax.numpy as jnp
from jax.experimental import pallas as pl
from jax.experimental.pallas import tpu as pltpu


def _tts_kernel(emb_ref, w_mel_ref, b_mel_ref, w_wav_ref, b_wav_ref,
                mel_t_ref, wav_ref):
    """Fused text2mel + mel2wave hot path for one frame tile.

    emb    : (TM, D)    bf16 token embeddings for this tile
    w_mel  : (D, M)     bf16 text2mel projection (pinned across the grid)
    b_mel  : (1, M)     f32
    w_wav  : (M, HOP)   bf16 mel2wave per-frame upsampling projection (pinned)
    b_wav  : (1, HOP)   f32
    mel_t  : (M, TM)    f32 output, frames on the lane axis (lane-dense store)
    wav    : (TM, HOP)  f32 output, per-frame waveform samples (lane-dense)
    """
    emb = emb_ref[...]                                             # (TM, D) bf16

    # --- text2mel stage: MXU matmul (bf16 in, f32 acc) + bias + tanh (EUP) ---
    mel = jnp.tanh(
        jnp.dot(emb, w_mel_ref[...], preferred_element_type=jnp.float32)
        + b_mel_ref[...]
    )                                                              # (TM, M) f32

    # Lane-dense store: (M, TM) with TM (multiple of 128) on lanes; the
    # transpose uses the XLU slot, which is otherwise idle here.
    mel_t_ref[...] = mel.T

    # --- mel2wave stage: MXU matmul (bf16 in, f32 acc) + bias + tanh (EUP) ---
    wav = jnp.tanh(
        jnp.dot(mel.astype(jnp.bfloat16), w_wav_ref[...],
                preferred_element_type=jnp.float32)
        + b_wav_ref[...]
    )                                                              # (TM, HOP) f32
    wav_ref[...] = wav


class TTSInterfacePallas:
    """JAX/Pallas analogue of ttsxai TTSInterface with synthetic sub-networks."""

    # Frame-tile size: multiple of 128 (lane-dense mel output).  1024 frames
    # => ~0.65 MiB of live tile data, ~1.3 MiB double-buffered: comfortably
    # inside scoped VMEM on v5e/v6e/v7x while amortizing per-step overhead.
    TM_MAX = 1024

    def __init__(self, key, *, vocab_size=64, emb_dim=32, n_mels=16,
                 hop_length=128, sampling_rate=22050):
        self.sampling_rate = sampling_rate
        self.hop_length = hop_length
        self.n_mels = n_mels
        self.emb_dim = emb_dim

        k0, k1, k2, k3, k4 = jax.random.split(key, 5)
        # Matmul operands stored in bf16 (MXU-native on v5e/v6e/v7x);
        # biases stay f32 for the f32 epilogue.
        self.emb_table = (0.1 * jax.random.normal(
            k0, (vocab_size, emb_dim), jnp.float32)).astype(jnp.bfloat16)
        self.w_mel = (0.1 * jax.random.normal(
            k1, (emb_dim, n_mels), jnp.float32)).astype(jnp.bfloat16)
        self.b_mel = 0.01 * jax.random.normal(k2, (1, n_mels), jnp.float32)
        self.w_wav = (0.1 * jax.random.normal(
            k3, (n_mels, hop_length), jnp.float32)).astype(jnp.bfloat16)
        self.b_wav = 0.01 * jax.random.normal(k4, (1, hop_length), jnp.float32)

        # jit the whole forward so the embedding gather, pad, pallas_call,
        # reshape and valid-region slices fuse into one program.
        self._forward = jax.jit(self._forward_impl)

    # ------------------------------------------------------------------ #
    def _run_kernel(self, emb_padded):
        """emb_padded: (T_pad, D) bf16 with T_pad a multiple of the tile size."""
        T_pad, D = emb_padded.shape
        M = self.n_mels
        HOP = self.hop_length
        TM = min(self.TM_MAX, T_pad)          # both are multiples of 128
        grid = (T_pad // TM,)

        cost = pl.CostEstimate(
            flops=2 * T_pad * (D * M + M * HOP),
            transcendentals=T_pad * (M + HOP),
            bytes_accessed=(T_pad * D * 2                 # emb (bf16)
                            + D * M * 2 + M * 4           # pinned params
                            + M * HOP * 2 + HOP * 4       # (fetched once)
                            + T_pad * M * 4               # mel out (f32)
                            + T_pad * HOP * 4),           # wav out (f32)
        )

        mel_t, wav_frames = pl.pallas_call(
            _tts_kernel,
            out_shape=(
                jax.ShapeDtypeStruct((M, T_pad), jnp.float32),    # mel, transposed
                jax.ShapeDtypeStruct((T_pad, HOP), jnp.float32),  # per-frame wave
            ),
            grid_spec=pltpu.PrefetchScalarGridSpec(
                num_scalar_prefetch=0,
                grid=grid,
                in_specs=[
                    pl.BlockSpec((TM, D), lambda i: (i, 0)),      # emb tile
                    pl.BlockSpec((D, M), lambda i: (0, 0)),       # w_mel (pinned)
                    pl.BlockSpec((1, M), lambda i: (0, 0)),       # b_mel (pinned)
                    pl.BlockSpec((M, HOP), lambda i: (0, 0)),     # w_wav (pinned)
                    pl.BlockSpec((1, HOP), lambda i: (0, 0)),     # b_wav (pinned)
                ],
                out_specs=(
                    pl.BlockSpec((M, TM), lambda i: (0, i)),      # lane-dense mel
                    pl.BlockSpec((TM, HOP), lambda i: (i, 0)),    # lane-dense wave
                ),
            ),
            compiler_params=pltpu.CompilerParams(
                dimension_semantics=("parallel",),                # 2 TCs on v7x
            ),
            cost_estimate=cost,
        )(emb_padded, self.w_mel, self.b_mel, self.w_wav, self.b_wav)
        return mel_t, wav_frames

    # ------------------------------------------------------------------ #
    def _forward_impl(self, text_ids):
        T = text_ids.shape[0]

        # --- text2mel front end: embedding lookup (fused in this jit) ---
        emb = jnp.take(self.emb_table, text_ids, axis=0)          # (T, D) bf16

        # Pad frames to a tile multiple (tile is a multiple of 128 so the mel
        # output stays lane-dense); padded rows are computed then discarded.
        T_128 = ((T + 127) // 128) * 128
        TM = min(self.TM_MAX, T_128)
        T_pad = ((T + TM - 1) // TM) * TM
        emb_padded = jnp.pad(emb, ((0, T_pad - T), (0, 0)))

        mel_t, wav_frames = self._run_kernel(emb_padded)          # Pallas hot path

        mel = mel_t[:, :T]                                        # (n_mels, T)
        text2mel_info = {
            'token_embeddings': emb.astype(jnp.float32),
            'n_frames': T,
        }

        # --- mel2wave: flatten valid per-frame samples ---
        wave = wav_frames[:T].reshape(-1)                         # (T * HOP,)

        # --- interface semantics: truncate to mel.shape[1] * hop_length ---
        # (length == T * hop_length exactly, so this is a free full-slice.)
        wave = wave[: T * self.hop_length]

        return {'wave': wave, 'mel': mel, **text2mel_info}

    def __call__(self, text_ids):
        return self._forward(text_ids)

    # Pure-JAX reference of the same synthetic sub-networks (for testing).
    def reference(self, text_ids):
        emb = jnp.take(self.emb_table, text_ids, axis=0).astype(jnp.float32)
        mel_tm = jnp.tanh(emb @ self.w_mel.astype(jnp.float32) + self.b_mel)
        wav = jnp.tanh(mel_tm.astype(jnp.bfloat16).astype(jnp.float32)
                       @ self.w_wav.astype(jnp.float32) + self.b_wav)
        mel = mel_tm.T                                            # (n_mels, T)
        wave = wav.reshape(-1)[: mel.shape[1] * self.hop_length]
        return {'wave': wave, 'mel': mel,
                'token_embeddings': emb, 'n_frames': text_ids.shape[0]}


if __name__ == "__main__":
    key = jax.random.PRNGKey(0)
    tts = TTSInterfacePallas(key)

    # small "text": 16 token ids
    text_ids = jax.random.randint(jax.random.PRNGKey(1), (16,), 0, 64)

    out = tts(text_ids)
    jax.block_until_ready(out['wave'])
    jax.block_until_ready(out['mel'])

    T_frames = out['mel'].shape[1]
    assert out['mel'].shape == (tts.n_mels, 16)
    assert out['wave'].shape == (T_frames * tts.hop_length,)
    assert out['wave'].dtype == jnp.float32
    assert out['n_frames'] == 16
    assert bool(jnp.all(jnp.isfinite(out['wave'])))
    assert bool(jnp.all(jnp.isfinite(out['mel'])))

    # Correctness against a pure-JAX reference of the same synthetic stages
    # (bf16 MXU operands, f32 accumulation -> loose-but-tight tolerance).
    ref = tts.reference(text_ids)
    assert jnp.allclose(out['mel'], ref['mel'], atol=2e-3, rtol=1e-2)
    assert jnp.allclose(out['wave'], ref['wave'], atol=2e-3, rtol=1e-2)

    print("KERNEL_OK")
</pallas_src>

<mosaic_0001>
module attributes {stable_mosaic.version = 11 : i64} {
  func.func @_tts_kernel(%arg0: i32, %arg1: memref<128x32xbf16, #tpu.memory_space<vmem>>, %arg2: memref<32x16xbf16, #tpu.memory_space<vmem>>, %arg3: memref<1x16xf32, #tpu.memory_space<vmem>>, %arg4: memref<16x128xbf16, #tpu.memory_space<vmem>>, %arg5: memref<1x128xf32, #tpu.memory_space<vmem>>, %arg6: memref<16x128xf32, #tpu.memory_space<vmem>>, %arg7: memref<128x128xf32, #tpu.memory_space<vmem>>) attributes {dimension_semantics = [#tpu.dimension_semantics<parallel>], iteration_bounds = array<i64: 1>, scalar_prefetch = 0 : i64, scratch_operands = 0 : i64, tpu.core_type = #tpu.core_type<tc>, window_params = [{transform_indices = @transform_0, window_bounds = array<i64: 128, 32>}, {pipeline_mode = #tpu.pipeline_mode<synchronous>, transform_indices = @transform_1, window_bounds = array<i64: 32, 16>}, {pipeline_mode = #tpu.pipeline_mode<synchronous>, transform_indices = @transform_2, window_bounds = array<i64: 1, 16>}, {pipeline_mode = #tpu.pipeline_mode<synchronous>, transform_indices = @transform_3, window_bounds = array<i64: 16, 128>}, {pipeline_mode = #tpu.pipeline_mode<synchronous>, transform_indices = @transform_4, window_bounds = array<i64: 1, 128>}, {transform_indices = @transform_5, window_bounds = array<i64: 16, 128>}, {transform_indices = @transform_6, window_bounds = array<i64: 128, 128>}]} {
    %c0 = arith.constant 0 : index
    %c0_0 = arith.constant 0 : index
    %0 = vector.load %arg1[%c0, %c0_0] : memref<128x32xbf16, #tpu.memory_space<vmem>>, vector<128x32xbf16>
    %c0_1 = arith.constant 0 : index
    %c0_2 = arith.constant 0 : index
    %1 = vector.load %arg2[%c0_1, %c0_2] : memref<32x16xbf16, #tpu.memory_space<vmem>>, vector<32x16xbf16>
    %cst = arith.constant dense<0.000000e+00> : vector<128x16xf32>
    %2 = tpu.matmul %0, %1, %cst {dimension_numbers = #tpu.dot_dimension_numbers<[1], [0], [0], [1], [0, 0, 1, 1], [], []>} : vector<128x32xbf16>, vector<32x16xbf16>, vector<128x16xf32> -> vector<128x16xf32>
    %c0_3 = arith.constant 0 : index
    %c0_4 = arith.constant 0 : index
    %3 = vector.load %arg3[%c0_3, %c0_4] : memref<1x16xf32, #tpu.memory_space<vmem>>, vector<1x16xf32>
    %4 = vector.broadcast %3 : vector<1x16xf32> to vector<128x16xf32>
    %5 = arith.addf %2, %4 : vector<128x16xf32>
    %6 = math.tanh %5 : vector<128x16xf32>
    %7 = tpu.transpose %6, [1, 0] : vector<128x16xf32> -> vector<16x128xf32>
    %c0_5 = arith.constant 0 : index
    %c0_6 = arith.constant 0 : index
    %8 = vector.load %arg6[%c0_5, %c0_6] : memref<16x128xf32, #tpu.memory_space<vmem>>, vector<16x128xf32>
    tpu.vector_store %arg6[%c0_5, %c0_6], %7 {strides = array<i32>} : memref<16x128xf32, #tpu.memory_space<vmem>>, vector<16x128xf32>,
    %9 = arith.truncf %6 : vector<128x16xf32> to vector<128x16xbf16>
    %c0_7 = arith.constant 0 : index
    %c0_8 = arith.constant 0 : index
    %10 = vector.load %arg4[%c0_7, %c0_8] : memref<16x128xbf16, #tpu.memory_space<vmem>>, vector<16x128xbf16>
    %cst_9 = arith.constant dense<0.000000e+00> : vector<128x128xf32>
    %11 = tpu.matmul %9, %10, %cst_9 {dimension_numbers = #tpu.dot_dimension_numbers<[1], [0], [0], [1], [0, 0, 1, 1], [], []>} : vector<128x16xbf16>, vector<16x128xbf16>, vector<128x128xf32> -> vector<128x128xf32>
    %c0_10 = arith.constant 0 : index
    %c0_11 = arith.constant 0 : index
    %12 = vector.load %arg5[%c0_10, %c0_11] : memref<1x128xf32, #tpu.memory_space<vmem>>, vector<1x128xf32>
    %13 = vector.broadcast %12 : vector<1x128xf32> to vector<128x128xf32>
    %14 = arith.addf %11, %13 : vector<128x128xf32>
    %15 = math.tanh %14 : vector<128x128xf32>
    %c0_12 = arith.constant 0 : index
    %c0_13 = arith.constant 0 : index
    %16 = vector.load %arg7[%c0_12, %c0_13] : memref<128x128xf32, #tpu.memory_space<vmem>>, vector<128x128xf32>
    tpu.vector_store %arg7[%c0_12, %c0_13], %15 {strides = array<i32>} : memref<128x128xf32, #tpu.memory_space<vmem>>, vector<128x128xf32>,
    return
  }
  func.func @transform_0(%arg0: i32) -> (i32, i32) {
    %c0_i32 = arith.constant 0 : i32
    %c0_i32_0 = arith.constant 0 : i32
    return %arg0, %c0_i32 : i32, i32
  }
  func.func @transform_1(%arg0: i32) -> (i32, i32) {
    %c0_i32 = arith.constant 0 : i32
    %c0_i32_0 = arith.constant 0 : i32
    %c0_i32_1 = arith.constant 0 : i32
    return %c0_i32, %c0_i32_0 : i32, i32
  }
  func.func @transform_2(%arg0: i32) -> (i32, i32) {
    %c0_i32 = arith.constant 0 : i32
    %c0_i32_0 = arith.constant 0 : i32
    %c0_i32_1 = arith.constant 0 : i32
    return %c0_i32, %c0_i32_0 : i32, i32
  }
  func.func @transform_3(%arg0: i32) -> (i32, i32) {
    %c0_i32 = arith.constant 0 : i32
    %c0_i32_0 = arith.constant 0 : i32
    %c0_i32_1 = arith.constant 0 : i32
    return %c0_i32, %c0_i32_0 : i32, i32
  }
  func.func @transform_4(%arg0: i32) -> (i32, i32) {
    %c0_i32 = arith.constant 0 : i32
    %c0_i32_0 = arith.constant 0 : i32
    %c0_i32_1 = arith.constant 0 : i32
    return %c0_i32, %c0_i32_0 : i32, i32
  }
  func.func @transform_5(%arg0: i32) -> (i32, i32) {
    %c0_i32 = arith.constant 0 : i32
    %c0_i32_0 = arith.constant 0 : i32
    return %c0_i32, %arg0 : i32, i32
  }
  func.func @transform_6(%arg0: i32) -> (i32, i32) {
    %c0_i32 = arith.constant 0 : i32
    %c0_i32_0 = arith.constant 0 : i32
    return %arg0, %c0_i32 : i32, i32
  }
}

</mosaic_0001>

<llo_original>
// kernel: _forward_impl.1
$region0: #{_forward_impl.1}
  #allocation0 [shape = 'u32[]', space=smem, size = 0x4, offset = 0x4, fixed_abs, tag = 'smem constant byte address 0x4 - core index']
  #allocation1 [shape = 'u32[72,128]{1,0:T(1,128)}', space=vmem, size = 0x9000, scoped, tag = 'internal scratch']
  %s0 = inlined_call_operand.vmem [shape: bf16[128,32], index: 0, kind: input, shape index: {}]
  %s1 = inlined_call_operand.vmem [shape: bf16[32,16], index: 1, kind: input, shape index: {}]
  %s2 = inlined_call_operand.vmem [shape: f32[1,16], index: 2, kind: input, shape index: {}]
  %s3 = inlined_call_operand.vmem [shape: bf16[16,128], index: 3, kind: input, shape index: {}]
  %s4 = inlined_call_operand.vmem [shape: f32[1,128], index: 4, kind: input, shape index: {}]
  %s5 = inlined_call_operand.hbm [shape: f32[16,128], index: 5, kind: output, shape index: {0}]
  %s6 = inlined_call_operand.vmem [shape: f32[128,128], index: 6, kind: output, shape index: {1}]
  %7 = xla_tuple %s5, %s6
  %s8 = sld [smem:[#allocation0]]
  $region38: #{_forward_impl.1} parent=0
    _
  %s10 = ssub.s32 1, %s8
  %s11 = scalar_select 0, %s10, %s8
  $region1: #{_forward_impl.1} parent=0
    #allocation2 [shape = 'u8[8192]{0}', space=vmem, size = 0x2000, scoped, tag = 'output window, operand 0, single buffered']
    #allocation3 [shape = 's32[1]{0}', space=sflag, size = 0x4, scoped, tag = 'scoped memory for _forward_impl.1']
    %12 = vsyncpa [#allocation3], 0
    // Predicated region
    $region2: #{_forward_impl.1} parent=1 // pred_check
      _
    $region3: #{_forward_impl.1} parent=1 // pred_check_branch
      %14 = sbr.rel (0) target = $region5
    $region4: #{_forward_impl.1} parent=1 // pred_region
      _
    $region5: #{_forward_impl.1} parent=1 // pred_fallthru
      _
    // Predicated region
    $region6: #{_forward_impl.1} parent=1 // pred_check
      _
    $region7: #{_forward_impl.1} parent=1 // pred_check_branch
      %16 = sbr.rel (0) target = $region9
    $region8: #{_forward_impl.1} parent=1 // pred_region
      _
    $region9: #{_forward_impl.1} parent=1 // pred_fallthru
      _
    // Predicated region
    $region10: #{_forward_impl.1} parent=1 // pred_check
      _
    $region11: #{_forward_impl.1} parent=1 // pred_check_branch
      %18 = sbr.rel (0) target = $region13
    $region12: #{_forward_impl.1} parent=1 // pred_region
      _
    $region13: #{_forward_impl.1} parent=1 // pred_fallthru
      _
    // Predicated region
    $region14: #{_forward_impl.1} parent=1 // pred_check
      _
    $region15: #{_forward_impl.1} parent=1 // pred_check_branch
      %20 = sbr.rel (0) target = $region17
    $region16: #{_forward_impl.1} parent=1 // pred_region
      _
    $region17: #{_forward_impl.1} parent=1 // pred_fallthru
      _
    // Predicated region
    $region18: #{_forward_impl.1} parent=1 // pred_check
      _
    $region19: #{_forward_impl.1} parent=1 // pred_check_branch
      %22 = sbr.rel (0) target = $region21
    $region20: #{_forward_impl.1} parent=1 // pred_region
      _
    $region21: #{_forward_impl.1} parent=1 // pred_fallthru
      _
    %v24 = vld [vmem:[%s0] sm:$0xf]
    %v25 = vld [vmem:[%s0 + $0x4] sm:$0xf]
    %v26 = vld [vmem:[%s0 + $0x8] sm:$0xf]
    %v27 = vld [vmem:[%s0 + $0xc] sm:$0xf]
    %v28 = vld [vmem:[%s0 + $0x10] sm:$0xf]
    %v29 = vld [vmem:[%s0 + $0x14] sm:$0xf]
    %v30 = vld [vmem:[%s0 + $0x18] sm:$0xf]
    %v31 = vld [vmem:[%s0 + $0x1c] sm:$0xf]
    %v32 = vld [vmem:[%s0 + $0x20] sm:$0xf]
    %v33 = vld [vmem:[%s0 + $0x24] sm:$0xf]
    %v34 = vld [vmem:[%s0 + $0x28] sm:$0xf]
    %v35 = vld [vmem:[%s0 + $0x2c] sm:$0xf]
    %v36 = vld [vmem:[%s0 + $0x30] sm:$0xf]
    %v37 = vld [vmem:[%s0 + $0x34] sm:$0xf]
    %v38 = vld [vmem:[%s0 + $0x38] sm:$0xf]
    %v39 = vld [vmem:[%s0 + $0x3c] sm:$0xf]
    %v40 = vld [vmem:[%s1] sm:$0xf]
    %v41 = vld [vmem:[%s1 + $0x4] sm:$0xf]
    %v42 = vld [vmem:[%s1 + $0x8] sm:$0xf]
    %v43 = vld [vmem:[%s1 + $0xc] sm:$0xf]
    %v44 = vld [vmem:[%s2] sm:$0x1]
    %v46 = vperm.slane %v44, 0
    %v64 = vunpack.c.l.b16 %v24
    %v65 = vunpack.c.l.b16 %v25
    %v66 = vunpack.c.l.b16 %v26
    %v67 = vunpack.c.l.b16 %v27
    %v68 = vunpack.c.l.b16 %v28
    %v69 = vunpack.c.l.b16 %v29
    %v70 = vunpack.c.l.b16 %v30
    %v71 = vunpack.c.l.b16 %v31
    %v72 = vunpack.c.l.b16 %v32
    %v73 = vunpack.c.l.b16 %v33
    %v74 = vunpack.c.l.b16 %v34
    %v75 = vunpack.c.l.b16 %v35
    %v76 = vunpack.c.l.b16 %v36
    %v77 = vunpack.c.l.b16 %v37
    %v78 = vunpack.c.l.b16 %v38
    %v79 = vunpack.c.l.b16 %v39
    %v80 = vpack.c.b16 %v65, %v64
    %v81 = vpack.c.b16 %v67, %v66
    %v82 = vpack.c.b16 %v69, %v68
    %v83 = vpack.c.b16 %v71, %v70
    %v84 = vpack.c.b16 %v73, %v72
    %v85 = vpack.c.b16 %v75, %v74
    %v86 = vpack.c.b16 %v77, %v76
    %v87 = vpack.c.b16 %v79, %v78
    %v92 = vunpack.c.l.b16 %v40
    %v93 = vunpack.c.l.b16 %v41
    %v94 = vunpack.c.l.b16 %v42
    %v95 = vunpack.c.l.b16 %v43
    %v96 = vpack.c.b16 %v93, %v92
    %v97 = vpack.c.b16 %v95, %v94
    %vm100 = vcmask 261120
    %v102 = vsel %vm100, %v80, 0
    %v105 = vsel %vm100, %v81, 0
    %v108 = vsel %vm100, %v82, 0
    %v111 = vsel %vm100, %v83, 0
    %v114 = vsel %vm100, %v84, 0
    %v117 = vsel %vm100, %v85, 0
    %v120 = vsel %vm100, %v86, 0
    %v123 = vsel %vm100, %v87, 0
    %125 = vmatpush.bf16.msra.mxu0 0
    %126 = vmatpush.bf16.msra.mxu0 0
    %127 = vmatpush.bf16.msra.mxu0 0
    %128 = vmatpush.bf16.msra.mxu0 0
    %129 = vmatpush.bf16.msra.mxu0 0
    %130 = vmatpush.bf16.msra.mxu0 0
    %131 = vmatpush.bf16.msra.mxu0 %v97
    %132 = vmatpush.bf16.msra.mxu0 %v96
    %133 = vmatmul.bf16.gmra.mxu0 %v102
    %v134 = vpop.f32.mrf.mxu0
    %v135 = vadd.f32 %v46, %v134
    %v136 = vpop.f32.mrf.mxu0
    %v137 = vadd.f32 %v46, %v136
    %138 = vmatmul.bf16.gmra.mxu0 %v105
    %v139 = vpop.f32.mrf.mxu0
    %v140 = vadd.f32 %v46, %v139
    %v141 = vpop.f32.mrf.mxu0
    %v142 = vadd.f32 %v46, %v141
    %143 = vmatmul.bf16.gmra.mxu0 %v108
    %v144 = vpop.f32.mrf.mxu0
    %v145 = vadd.f32 %v46, %v144
    %v146 = vpop.f32.mrf.mxu0
    %v147 = vadd.f32 %v46, %v146
    %148 = vmatmul.bf16.gmra.mxu0 %v111
    %v149 = vpop.f32.mrf.mxu0
    %v150 = vadd.f32 %v46, %v149
    %v151 = vpop.f32.mrf.mxu0
    %v152 = vadd.f32 %v46, %v151
    %153 = vmatmul.bf16.gmra.mxu0 %v114
    %v154 = vpop.f32.mrf.mxu0
    %v155 = vadd.f32 %v46, %v154
    %v156 = vpop.f32.mrf.mxu0
    %v157 = vadd.f32 %v46, %v156
    %158 = vmatmul.bf16.gmra.mxu0 %v117
    %v159 = vpop.f32.mrf.mxu0
    %v160 = vadd.f32 %v46, %v159
    %v161 = vpop.f32.mrf.mxu0
    %v162 = vadd.f32 %v46, %v161
    %163 = vmatmul.bf16.gmra.mxu0 %v120
    %v164 = vpop.f32.mrf.mxu0
    %v165 = vadd.f32 %v46, %v164
    %v166 = vpop.f32.mrf.mxu0
    %v167 = vadd.f32 %v46, %v166
    %168 = vmatmul.bf16.gmra.mxu0 %v123
    %v169 = vpop.f32.mrf.mxu0
    %v170 = vadd.f32 %v46, %v169
    %v171 = vpop.f32.mrf.mxu0
    %v172 = vadd.f32 %v46, %v171
    %173 = vdwg.mxu0
    %v174 = vtanh.pop %v135
    %v175 = vtanh.pop %v137
    %v176 = vtanh.pop %v140
    %v177 = vtanh.pop %v142
    %v178 = vtanh.pop %v145
    %v179 = vtanh.pop %v147
    %v180 = vtanh.pop %v150
    %v181 = vtanh.pop %v152
    %v182 = vtanh.pop %v155
    %v183 = vtanh.pop %v157
    %v184 = vtanh.pop %v160
    %v185 = vtanh.pop %v162
    %v186 = vtanh.pop %v165
    %v187 = vtanh.pop %v167
    %v188 = vtanh.pop %v170
    %v189 = vtanh.pop %v172
    %190 = vxpose.xlu0.b32.start [1/16] %v174, 128
    %191 = vxpose.xlu0.b32.cont [2/16] %v175, 128
    %192 = vxpose.xlu0.b32.cont [3/16] %v176, 128
    %193 = vxpose.xlu0.b32.cont [4/16] %v177, 128
    %194 = vxpose.xlu0.b32.cont [5/16] %v178, 128
    %195 = vxpose.xlu0.b32.cont [6/16] %v179, 128
    %196 = vxpose.xlu0.b32.cont [7/16] %v180, 128
    %197 = vxpose.xlu0.b32.cont [8/16] %v181, 128
    %198 = vxpose.xlu0.b32.cont [9/16] %v182, 128
    %199 = vxpose.xlu0.b32.cont [10/16] %v183, 128
    %200 = vxpose.xlu0.b32.cont [11/16] %v184, 128
    %201 = vxpose.xlu0.b32.cont [12/16] %v185, 128
    %202 = vxpose.xlu0.b32.cont [13/16] %v186, 128
    %203 = vxpose.xlu0.b32.cont [14/16] %v187, 128
    %204 = vxpose.xlu0.b32.cont [15/16] %v188, 128
    %205 = vxpose.xlu0.b32.end [16/16] %v189, 128
    %v206 = vpop.trf.xlu0
    %v207 = vpop.trf.xlu0
    %v208 = vpop.trf.xlu0
    %v209 = vpop.trf.xlu0
    %v210 = vpop.trf.xlu0
    %v211 = vpop.trf.xlu0
    %v212 = vpop.trf.xlu0
    %v213 = vpop.trf.xlu0
    %v214 = vpop.trf.xlu0
    %v215 = vpop.trf.xlu0
    %v216 = vpop.trf.xlu0
    %v217 = vpop.trf.xlu0
    %v218 = vpop.trf.xlu0
    %v219 = vpop.trf.xlu0
    %v220 = vpop.trf.xlu0
    %v221 = vpop.trf.xlu0
    %222 = vst [vmem:[#allocation2] sm:$0xff] %v206
    %223 = vst [vmem:[#allocation2 + $0x8] sm:$0xff] %v207
    %v224 = vpack.c.bf16 %v175, %v174
    %v225 = vpack.c.bf16 %v177, %v176
    %v226 = vpack.c.bf16 %v179, %v178
    %v227 = vpack.c.bf16 %v181, %v180
    %v228 = vpack.c.bf16 %v183, %v182
    %v229 = vpack.c.bf16 %v185, %v184
    %v230 = vpack.c.bf16 %v187, %v186
    %v231 = vpack.c.bf16 %v189, %v188
    %v232 = vld [vmem:[%s3] sm:$0xf]
    %v233 = vld [vmem:[%s3 + $0x4] sm:$0xf]
    %v234 = vld [vmem:[%s4] sm:$0x1]
    %v236 = vperm.slane %v234, 0
    %v240 = vunpack.c.l.b16 %v232
    %v241 = vunpack.c.l.b16 %v233
    %v242 = vpack.c.b16 %v241, %v240
    %vm244 = vcmask 130048
    %v246 = vsel %vm244, %v224, 0
    %v249 = vsel %vm244, %v225, 0
    %v252 = vsel %vm244, %v226, 0
    %v255 = vsel %vm244, %v227, 0
    %v258 = vsel %vm244, %v228, 0
    %v261 = vsel %vm244, %v229, 0
    %v264 = vsel %vm244, %v230, 0
    %v267 = vsel %vm244, %v231, 0
    %269 = vmatpush.bf16.msra.mxu0 0
    %270 = vmatpush.bf16.msra.mxu0 0
    %271 = vmatpush.bf16.msra.mxu0 0
    %272 = vmatpush.bf16.msra.mxu0 0
    %273 = vmatpush.bf16.msra.mxu0 0
    %274 = vmatpush.bf16.msra.mxu0 0
    %275 = vmatpush.bf16.msra.mxu0 0
    %276 = vmatpush.bf16.msra.mxu0 %v242
    %277 = vmatmul.bf16.gmra.mxu0 %v246
    %v278 = vpop.f32.mrf.mxu0
    %v279 = vadd.f32 %v236, %v278
    %v280 = vpop.f32.mrf.mxu0
    %v281 = vadd.f32 %v236, %v280
    %282 = vmatmul.bf16.gmra.mxu0 %v249
    %v283 = vpop.f32.mrf.mxu0
    %v284 = vadd.f32 %v236, %v283
    %v285 = vpop.f32.mrf.mxu0
    %v286 = vadd.f32 %v236, %v285
    %287 = vmatmul.bf16.gmra.mxu0 %v252
    %v288 = vpop.f32.mrf.mxu0
    %v289 = vadd.f32 %v236, %v288
    %v290 = vpop.f32.mrf.mxu0
    %v291 = vadd.f32 %v236, %v290
    %292 = vmatmul.bf16.gmra.mxu0 %v255
    %v293 = vpop.f32.mrf.mxu0
    %v294 = vadd.f32 %v236, %v293
    %v295 = vpop.f32.mrf.mxu0
    %v296 = vadd.f32 %v236, %v295
    %297 = vmatmul.bf16.gmra.mxu0 %v258
    %v298 = vpop.f32.mrf.mxu0
    %v299 = vadd.f32 %v236, %v298
    %v300 = vpop.f32.mrf.mxu0
    %v301 = vadd.f32 %v236, %v300
    %302 = vmatmul.bf16.gmra.mxu0 %v261
    %v303 = vpop.f32.mrf.mxu0
    %v304 = vadd.f32 %v236, %v303
    %v305 = vpop.f32.mrf.mxu0
    %v306 = vadd.f32 %v236, %v305
    %307 = vmatmul.bf16.gmra.mxu0 %v264
    %v308 = vpop.f32.mrf.mxu0
    %v309 = vadd.f32 %v236, %v308
    %v310 = vpop.f32.mrf.mxu0
    %v311 = vadd.f32 %v236, %v310
    %312 = vmatmul.bf16.gmra.mxu0 %v267
    %v313 = vpop.f32.mrf.mxu0
    %v314 = vadd.f32 %v236, %v313
    %v315 = vpop.f32.mrf.mxu0
    %v316 = vadd.f32 %v236, %v315
    %317 = vdwg.mxu0
    %v318 = vtanh.pop %v279
    %v319 = vtanh.pop %v281
    %v320 = vtanh.pop %v284
    %v321 = vtanh.pop %v286
    %v322 = vtanh.pop %v289
    %v323 = vtanh.pop %v291
    %v324 = vtanh.pop %v294
    %v325 = vtanh.pop %v296
    %v326 = vtanh.pop %v299
    %v327 = vtanh.pop %v301
    %v328 = vtanh.pop %v304
    %v329 = vtanh.pop %v306
    %v330 = vtanh.pop %v309
    %v331 = vtanh.pop %v311
    %v332 = vtanh.pop %v314
    %v333 = vtanh.pop %v316
    %334 = vst [vmem:[%s6] sm:$0xff] %v318
    %335 = vst [vmem:[%s6 + $0x8] sm:$0xff] %v319
    %336 = vst [vmem:[%s6 + $0x10] sm:$0xff] %v320
    %337 = vst [vmem:[%s6 + $0x18] sm:$0xff] %v321
    %338 = vst [vmem:[%s6 + $0x20] sm:$0xff] %v322
    %339 = vst [vmem:[%s6 + $0x28] sm:$0xff] %v323
    %340 = vst [vmem:[%s6 + $0x30] sm:$0xff] %v324
    %341 = vst [vmem:[%s6 + $0x38] sm:$0xff] %v325
    %342 = vst [vmem:[%s6 + $0x40] sm:$0xff] %v326
    %343 = vst [vmem:[%s6 + $0x48] sm:$0xff] %v327
    %344 = vst [vmem:[%s6 + $0x50] sm:$0xff] %v328
    %345 = vst [vmem:[%s6 + $0x58] sm:$0xff] %v329
    %346 = vst [vmem:[%s6 + $0x60] sm:$0xff] %v330
    %347 = vst [vmem:[%s6 + $0x68] sm:$0xff] %v331
    %348 = vst [vmem:[%s6 + $0x70] sm:$0xff] %v332
    %349 = vst [vmem:[%s6 + $0x78] sm:$0xff] %v333
    // Predicated region
    $region22: #{_forward_impl.1} parent=1 // pred_check
      _
    $region23: #{_forward_impl.1} parent=1 // pred_check_branch
      %351 = sbr.rel (0) target = $region25
    $region24: #{_forward_impl.1} parent=1 // pred_region
      %353 = vsyncadd [#allocation3], 0
      %s354 = sshll.u32 [#allocation2], 4
      %s355 = int_to_ptr.vmem [resolvable:$true] %s354
      %s356 = sshll.u32 %s5, 4
      %s357 = int_to_ptr.hbm [resolvable:$true] %s356
      %362 = dma.vmem_to_hbm [thread:$0]  %s355, 256, %s357, [#allocation3], 128, 128, 8
    $region25: #{_forward_impl.1} parent=1 // pred_fallthru
      _
    // Predicated region
    $region26: #{_forward_impl.1} parent=1 // pred_check
      _
    $region27: #{_forward_impl.1} parent=1 // pred_check_branch
      %364 = sbr.rel (0) target = $region29
    $region28: #{_forward_impl.1} parent=1 // pred_region
      _
    $region29: #{_forward_impl.1} parent=1 // pred_fallthru
      _
    // Predicated region
    $region30: #{_forward_impl.1} parent=1 // pred_check
      _
    $region31: #{_forward_impl.1} parent=1 // pred_check_branch
      %366 = sbr.rel (0) target = $region33
    $region32: #{_forward_impl.1} parent=1 // pred_region
      %368 = dma.done [#allocation3], 256
    $region33: #{_forward_impl.1} parent=1 // pred_fallthru
      _
    // Predicated region
    $region34: #{_forward_impl.1} parent=1 // pred_check
      _
    $region35: #{_forward_impl.1} parent=1 // pred_check_branch
      %370 = sbr.rel (0) target = $region37
    $region36: #{_forward_impl.1} parent=1 // pred_region
      _
    $region37: #{_forward_impl.1} parent=1 // pred_fallthru
      _
    %371 = vsyncpa [#allocation3], 1

</llo_original>
